<compile_context>
chip_gen: v7x
topology: tpu7x:2x2x1
jax: 0.10.0
libtpu: 0.0.40
codegen_flags: <defaults>
</compile_context>

<pallas_src>
import jax
import jax.numpy as jnp
from jax.experimental import pallas as pl
from jax.experimental.pallas import tpu as pltpu


def _student_attention_kernel(x0_ref, x1_ref, w_ref, y0_ref, y1_ref):
    # x0_ref / x1_ref: (Btile, D) = row l=0 / l=1 of each batch element.
    # w_ref: (1, D) lane-dense weight vector (DK = 1).
    x0 = x0_ref[...].astype(jnp.float32)
    x1 = x1_ref[...].astype(jnp.float32)
    w = w_ref[...].astype(jnp.float32)                    # (1, D)

    # Fixed positional encoding: row 0 -> +1, row 1 -> -1 (R = vstack(r1, -r1)).
    xp0 = x0 + 1.0                                        # (Btile, D)
    xp1 = x1 - 1.0                                        # (Btile, D)

    # xQ = X_pos @ W_Q with DK=1 -> one scalar per row (lane reduce on XLU).
    q0 = jnp.sum(xp0 * w, axis=-1, keepdims=True)         # (Btile, 1)
    q1 = jnp.sum(xp1 * w, axis=-1, keepdims=True)         # (Btile, 1)

    # Scores s[l, m] = q_l * q_m ; softmax over m (2 entries per row).
    s00 = q0 * q0
    s01 = q0 * q1                                         # == s10
    s11 = q1 * q1
    m0 = jnp.maximum(s00, s01)
    m1 = jnp.maximum(s01, s11)
    e00 = jnp.exp(s00 - m0)
    e01 = jnp.exp(s01 - m0)
    e10 = jnp.exp(s01 - m1)
    e11 = jnp.exp(s11 - m1)
    inv0 = pl.reciprocal(e00 + e01, approx=True)          # EUP vrcp (free slot)
    inv1 = pl.reciprocal(e10 + e11, approx=True)
    a00 = e00 * inv0
    a01 = e01 * inv0
    a10 = e10 * inv1
    a11 = e11 * inv1

    # Y[l] = sum_m A[l, m] * X_pos[m]  -- pure VPU broadcast mul-add (no MXU).
    y0_ref[...] = (a00 * xp0 + a01 * xp1).astype(y0_ref.dtype)
    y1_ref[...] = (a10 * xp0 + a11 * xp1).astype(y1_ref.dtype)


def _pick_batch_tile(B, max_tile=4096):
    """Largest batch tile: whole batch if it fits, else an 8-aligned divisor."""
    if B <= max_tile:
        return B
    for cand in range(min(max_tile, B), 7, -1):
        if B % cand == 0 and cand % 8 == 0:
            return cand
    return B  # fall back to a single big block


def student_attention_forward(x, w_q):
    """x: (B, L=2, D) float32, w_q: (D, DK=1) float32 -> (B, 2, D) float32."""
    B, L, D = x.shape
    assert L == 2, "kernel implements the module's fixed L=2 positional code"
    assert w_q.shape == (D, 1), "kernel implements the DK=1 (squeeze(-1)) case"

    # Wrapper-side layout plumbing: split the two sequence rows so the kernel
    # blocks are sublane-dense (Btile, D) slabs; W_Q is presented lane-dense.
    x0 = x[:, 0, :]                   # (B, D)
    x1 = x[:, 1, :]                   # (B, D)
    w_lane = w_q.reshape(1, D)        # (1, D)

    btile = _pick_batch_tile(B)
    grid = (B // btile,)

    row_spec = pl.BlockSpec((btile, D), lambda b: (b, 0))
    w_spec = pl.BlockSpec((1, D), lambda b: (0, 0))       # resident across grid

    y0, y1 = pl.pallas_call(
        _student_attention_kernel,
        out_shape=(
            jax.ShapeDtypeStruct((B, D), x.dtype),
            jax.ShapeDtypeStruct((B, D), x.dtype),
        ),
        grid_spec=pltpu.PrefetchScalarGridSpec(
            num_scalar_prefetch=0,
            grid=grid,
            in_specs=[row_spec, row_spec, w_spec],
            out_specs=[row_spec, row_spec],
        ),
        compiler_params=pltpu.CompilerParams(
            dimension_semantics=("parallel",)),
    )(x0, x1, w_lane)

    return jnp.stack((y0, y1), axis=1)                    # (B, 2, D)


def _reference_forward(x, w_q):
    """Pure-JAX reference mirroring the PyTorch module."""
    B, L, D = x.shape
    r1 = jnp.ones((D,), jnp.float32)
    R = jnp.stack([r1, -r1], axis=0)                      # (2, D)
    x_pos = x + R[None]
    xq = jnp.einsum('blk,kd->bld', x_pos, w_q)[..., 0]    # (B, L)
    s = jnp.einsum('bl,bm->blm', xq, xq)
    a = jax.nn.softmax(s, axis=-1)
    return jnp.einsum('blm,bmd->bld', a, x_pos)


if __name__ == "__main__":
    # Small shapes consistent with the module: L = 2 (fixed positional code).
    B, L, D, DK = 2, 2, 32, 1

    key = jax.random.PRNGKey(0)
    kx, kw = jax.random.split(key)
    x = jax.random.normal(kx, (B, L, D), dtype=jnp.float32)
    # init_type='random': W_Q ~ randn(D, DK), deterministic via PRNGKey(0) split.
    w_q = jax.random.normal(kw, (D, DK), dtype=jnp.float32)

    y = student_attention_forward(x, w_q)
    y = jax.block_until_ready(y)

    y_ref = _reference_forward(x, w_q)
    # approx=True reciprocal (EUP vrcp) is not correctly rounded -> 1e-3 tol.
    assert jnp.allclose(y, y_ref, atol=1e-3, rtol=1e-3), "mismatch vs reference"

    print("KERNEL_OK")
</pallas_src>

<mosaic_0001>
module attributes {stable_mosaic.version = 11 : i64} {
  func.func @_student_attention_kernel(%arg0: i32, %arg1: memref<2x32xf32, #tpu.memory_space<vmem>>, %arg2: memref<2x32xf32, #tpu.memory_space<vmem>>, %arg3: memref<1x32xf32, #tpu.memory_space<vmem>>, %arg4: memref<2x32xf32, #tpu.memory_space<vmem>>, %arg5: memref<2x32xf32, #tpu.memory_space<vmem>>) attributes {dimension_semantics = [#tpu.dimension_semantics<parallel>], iteration_bounds = array<i64: 1>, scalar_prefetch = 0 : i64, scratch_operands = 0 : i64, tpu.core_type = #tpu.core_type<tc>, window_params = [{transform_indices = @transform_0, window_bounds = array<i64: 2, 32>}, {transform_indices = @transform_1, window_bounds = array<i64: 2, 32>}, {pipeline_mode = #tpu.pipeline_mode<synchronous>, transform_indices = @transform_2, window_bounds = array<i64: 1, 32>}, {transform_indices = @transform_3, window_bounds = array<i64: 2, 32>}, {transform_indices = @transform_4, window_bounds = array<i64: 2, 32>}]} {
    %c0 = arith.constant 0 : index
    %c0_0 = arith.constant 0 : index
    %0 = vector.load %arg1[%c0, %c0_0] : memref<2x32xf32, #tpu.memory_space<vmem>>, vector<2x32xf32>
    %c0_1 = arith.constant 0 : index
    %c0_2 = arith.constant 0 : index
    %1 = vector.load %arg2[%c0_1, %c0_2] : memref<2x32xf32, #tpu.memory_space<vmem>>, vector<2x32xf32>
    %c0_3 = arith.constant 0 : index
    %c0_4 = arith.constant 0 : index
    %2 = vector.load %arg3[%c0_3, %c0_4] : memref<1x32xf32, #tpu.memory_space<vmem>>, vector<1x32xf32>
    %cst = arith.constant 1.000000e+00 : f32
    %3 = vector.broadcast %cst : f32 to vector<2x32xf32>
    %4 = arith.addf %0, %3 : vector<2x32xf32>
    %cst_5 = arith.constant 1.000000e+00 : f32
    %5 = vector.broadcast %cst_5 : f32 to vector<2x32xf32>
    %6 = arith.subf %1, %5 : vector<2x32xf32>
    %7 = vector.broadcast %2 : vector<1x32xf32> to vector<2x32xf32>
    %8 = arith.mulf %4, %7 : vector<2x32xf32>
    %cst_6 = arith.constant dense<0.000000e+00> : vector<2xf32>
    %9 = vector.multi_reduction <add>, %8, %cst_6 [1] : vector<2x32xf32> to vector<2xf32>
    %10 = vector.shape_cast %9 : vector<2xf32> to vector<2x1xf32>
    %11 = vector.broadcast %2 : vector<1x32xf32> to vector<2x32xf32>
    %12 = arith.mulf %6, %11 : vector<2x32xf32>
    %cst_7 = arith.constant dense<0.000000e+00> : vector<2xf32>
    %13 = vector.multi_reduction <add>, %12, %cst_7 [1] : vector<2x32xf32> to vector<2xf32>
    %14 = vector.shape_cast %13 : vector<2xf32> to vector<2x1xf32>
    %15 = arith.mulf %10, %10 : vector<2x1xf32>
    %16 = arith.mulf %10, %14 : vector<2x1xf32>
    %17 = arith.mulf %14, %14 : vector<2x1xf32>
    %18 = arith.maximumf %15, %16 : vector<2x1xf32>
    %19 = arith.maximumf %16, %17 : vector<2x1xf32>
    %20 = arith.subf %15, %18 : vector<2x1xf32>
    %21 = math.exp %20 : vector<2x1xf32>
    %22 = arith.subf %16, %18 : vector<2x1xf32>
    %23 = math.exp %22 : vector<2x1xf32>
    %24 = arith.subf %16, %19 : vector<2x1xf32>
    %25 = math.exp %24 : vector<2x1xf32>
    %26 = arith.subf %17, %19 : vector<2x1xf32>
    %27 = math.exp %26 : vector<2x1xf32>
    %28 = arith.addf %21, %23 : vector<2x1xf32>
    %29 = tpu.reciprocal %28 {approx = true} : vector<2x1xf32> -> vector<2x1xf32>
    %30 = arith.addf %25, %27 : vector<2x1xf32>
    %31 = tpu.reciprocal %30 {approx = true} : vector<2x1xf32> -> vector<2x1xf32>
    %32 = arith.mulf %21, %29 : vector<2x1xf32>
    %33 = arith.mulf %23, %29 : vector<2x1xf32>
    %34 = arith.mulf %25, %31 : vector<2x1xf32>
    %35 = arith.mulf %27, %31 : vector<2x1xf32>
    %36 = vector.broadcast %32 : vector<2x1xf32> to vector<2x32xf32>
    %37 = arith.mulf %36, %4 : vector<2x32xf32>
    %38 = vector.broadcast %33 : vector<2x1xf32> to vector<2x32xf32>
    %39 = arith.mulf %38, %6 : vector<2x32xf32>
    %40 = arith.addf %37, %39 : vector<2x32xf32>
    %c0_8 = arith.constant 0 : index
    %c0_9 = arith.constant 0 : index
    %41 = vector.load %arg4[%c0_8, %c0_9] : memref<2x32xf32, #tpu.memory_space<vmem>>, vector<2x32xf32>
    tpu.vector_store %arg4[%c0_8, %c0_9], %40 {strides = array<i32>} : memref<2x32xf32, #tpu.memory_space<vmem>>, vector<2x32xf32>,
    %42 = vector.broadcast %34 : vector<2x1xf32> to vector<2x32xf32>
    %43 = arith.mulf %42, %4 : vector<2x32xf32>
    %44 = vector.broadcast %35 : vector<2x1xf32> to vector<2x32xf32>
    %45 = arith.mulf %44, %6 : vector<2x32xf32>
    %46 = arith.addf %43, %45 : vector<2x32xf32>
    %c0_10 = arith.constant 0 : index
    %c0_11 = arith.constant 0 : index
    %47 = vector.load %arg5[%c0_10, %c0_11] : memref<2x32xf32, #tpu.memory_space<vmem>>, vector<2x32xf32>
    tpu.vector_store %arg5[%c0_10, %c0_11], %46 {strides = array<i32>} : memref<2x32xf32, #tpu.memory_space<vmem>>, vector<2x32xf32>,
    return
  }
  func.func @transform_0(%arg0: i32) -> (i32, i32) {
    %c0_i32 = arith.constant 0 : i32
    %c0_i32_0 = arith.constant 0 : i32
    return %arg0, %c0_i32 : i32, i32
  }
  func.func @transform_1(%arg0: i32) -> (i32, i32) {
    %c0_i32 = arith.constant 0 : i32
    %c0_i32_0 = arith.constant 0 : i32
    return %arg0, %c0_i32 : i32, i32
  }
  func.func @transform_2(%arg0: i32) -> (i32, i32) {
    %c0_i32 = arith.constant 0 : i32
    %c0_i32_0 = arith.constant 0 : i32
    %c0_i32_1 = arith.constant 0 : i32
    return %c0_i32, %c0_i32_0 : i32, i32
  }
  func.func @transform_3(%arg0: i32) -> (i32, i32) {
    %c0_i32 = arith.constant 0 : i32
    %c0_i32_0 = arith.constant 0 : i32
    return %arg0, %c0_i32 : i32, i32
  }
  func.func @transform_4(%arg0: i32) -> (i32, i32) {
    %c0_i32 = arith.constant 0 : i32
    %c0_i32_0 = arith.constant 0 : i32
    return %arg0, %c0_i32 : i32, i32
  }
}

</mosaic_0001>

<llo_original>
// kernel: tpu_custom_call.1
$region0: #{tpu_custom_call.1}
  #allocation0 [shape = 'u32[]', space=smem, size = 0x4, offset = 0x4, fixed_abs, tag = 'smem constant byte address 0x4 - core index']
  #allocation1 [shape = 'u32[144,128]{1,0:T(1,128)}', space=vmem, size = 0x12000, scoped, tag = 'internal scratch']
  %s0 = inlined_call_operand.hbm [shape: f32[2,32], index: 0, kind: input, shape index: {}]
  %s1 = inlined_call_operand.vmem [shape: f32[2,32], index: 1, kind: input, shape index: {}]
  %s2 = inlined_call_operand.vmem [shape: f32[1,32], index: 2, kind: input, shape index: {}]
  %s3 = inlined_call_operand.hbm [shape: f32[2,32], index: 3, kind: output, shape index: {0}]
  %s4 = inlined_call_operand.hbm [shape: f32[2,32], index: 4, kind: output, shape index: {1}]
  %5 = xla_tuple %s3, %s4
  %s6 = sld [smem:[#allocation0]]
  $region34: #{tpu_custom_call.1} parent=0
    _
  %s8 = ssub.s32 1, %s6
  %s9 = scalar_select 0, %s8, %s6
  $region1: #{tpu_custom_call.1} parent=0
    #allocation2 [shape = 'u8[1024]{0}', space=vmem, size = 0x400, scoped, tag = 'input window, operand 0, single buffered']
    #allocation3 [shape = 's32[1]{0}', space=sflag, size = 0x4, scoped, tag = 'scoped memory for tpu_custom_call.1']
    #allocation4 [shape = 's32[1]{0}', space=sflag, size = 0x4, scoped, tag = 'scoped memory for tpu_custom_call.1']
    #allocation5 [shape = 'u8[1024]{0}', space=vmem, size = 0x400, scoped, tag = 'output window, operand 0, single buffered']
    #allocation6 [shape = 'u8[1024]{0}', space=vmem, size = 0x400, scoped, tag = 'output window, operand 1, single buffered']
    #allocation7 [shape = 's32[1]{0}', space=sflag, size = 0x4, scoped, tag = 'scoped memory for tpu_custom_call.1']
    %10 = vsyncpa [#allocation3], 0
    %11 = vsyncpa [#allocation4], 0
    %12 = vsyncpa [#allocation7], 0
    // Predicated region
    $region2: #{tpu_custom_call.1} parent=1 // pred_check
      _
    $region3: #{tpu_custom_call.1} parent=1 // pred_check_branch
      %14 = sbr.rel (0) target = $region5
    $region4: #{tpu_custom_call.1} parent=1 // pred_region
      %s16 = ssub.s32 32, 32
      %17 = vsyncadd [#allocation3], %s16
      %s19 = sshll.u32 [#allocation2], 4
      %s20 = int_to_ptr.vmem [resolvable:$true] %s19
      %22 = dma.hbm_to_vmem [thread:$0]  %s0, 32, %s20, [#allocation3]
    $region5: #{tpu_custom_call.1} parent=1 // pred_fallthru
      _
    // Predicated region
    $region6: #{tpu_custom_call.1} parent=1 // pred_check
      _
    $region7: #{tpu_custom_call.1} parent=1 // pred_check_branch
      %24 = sbr.rel (0) target = $region9
    $region8: #{tpu_custom_call.1} parent=1 // pred_region
      _
    $region9: #{tpu_custom_call.1} parent=1 // pred_fallthru
      _
    // Predicated region
    $region10: #{tpu_custom_call.1} parent=1 // pred_check
      _
    $region11: #{tpu_custom_call.1} parent=1 // pred_check_branch
      %26 = sbr.rel (0) target = $region13
    $region12: #{tpu_custom_call.1} parent=1 // pred_region
      _
    $region13: #{tpu_custom_call.1} parent=1 // pred_fallthru
      _
    // Predicated region
    $region14: #{tpu_custom_call.1} parent=1 // pred_check
      _
    $region15: #{tpu_custom_call.1} parent=1 // pred_check_branch
      %28 = sbr.rel (0) target = $region17
    $region16: #{tpu_custom_call.1} parent=1 // pred_region
      %29 = dma.done [#allocation3], 32
    $region17: #{tpu_custom_call.1} parent=1 // pred_fallthru
      _
    %v30 = vld [vmem:[#allocation2] sm:$0x3]
    %v31 = vld [vmem:[%s1] sm:$0x3]
    %v32 = vld [vmem:[%s2] sm:$0x1]
    %v33 = vadd.f32 %v30, 1.0
    %v34 = vsub.f32 %v31, 1.0
    %v36 = vlaneseq
    %v37 = vshrl.u32 %v36, 7
    %v38 = vsub.s32 0, %v37
    %v39 = vrot.slane %v32, %v38
    %v41 = vmul.f32 %v33, %v39
    %vm42 = vcmask 254976
    %v43 = vsel %vm42, %v41, 0.0
    %44 = vadd.xlane.f32.xlu0 %v43
    %v45 = vpop.xlane.xlu0 %44
    %v46 = vmul.f32 %v34, %v39
    %v47 = vsel %vm42, %v46, 0.0
    %48 = vadd.xlane.f32.xlu0 %v47
    %v49 = vpop.xlane.xlu0 %48
    %v50 = vmul.f32 %v45, %v45
    %v51 = vmul.f32 %v45, %v49
    %v52 = vmul.f32 %v49, %v49
    %v53 = vmax.f32 %v50, %v51
    %v54 = vmax.f32 %v51, %v52
    %v55 = vsub.f32 %v50, %v53
    %v56 = vmul.f32 %v55, 1.442695
    %v57 = vpow.pop %v56
    %v58 = vsub.f32 %v51, %v53
    %v59 = vmul.f32 %v58, 1.442695
    %v60 = vpow.pop %v59
    %v61 = vsub.f32 %v51, %v54
    %v62 = vmul.f32 %v61, 1.442695
    %v63 = vpow.pop %v62
    %v64 = vsub.f32 %v52, %v54
    %v65 = vmul.f32 %v64, 1.442695
    %v66 = vpow.pop %v65
    %v67 = vadd.f32 %v57, %v60
    %v68 = vrcp.pop %v67
    %v69 = vadd.f32 %v63, %v66
    %v70 = vrcp.pop %v69
    %v71 = vmul.f32 %v57, %v68
    %v72 = vmul.f32 %v60, %v68
    %v73 = vmul.f32 %v63, %v70
    %v74 = vmul.f32 %v66, %v70
    %v75 = vmul.f32 %v71, %v33
    %v76 = vmul.f32 %v72, %v34
    %v77 = vadd.f32 %v75, %v76
    %78 = vst.msk [vmem:[#allocation5] sm:$0x3] %vm42, %v77
    %v79 = vmul.f32 %v73, %v33
    %v80 = vmul.f32 %v74, %v34
    %v81 = vadd.f32 %v79, %v80
    %82 = vst.msk [vmem:[#allocation6] sm:$0x3] %vm42, %v81
    // Predicated region
    $region18: #{tpu_custom_call.1} parent=1 // pred_check
      _
    $region19: #{tpu_custom_call.1} parent=1 // pred_check_branch
      %84 = sbr.rel (0) target = $region21
    $region20: #{tpu_custom_call.1} parent=1 // pred_region
      %s86 = ssub.s32 32, 32
      %87 = vsyncadd [#allocation4], %s86
      %s89 = sshll.u32 [#allocation5], 4
      %s90 = int_to_ptr.vmem [resolvable:$true] %s89
      %92 = dma.vmem_to_hbm [thread:$0]  %s90, 32, %s3, [#allocation4]
    $region21: #{tpu_custom_call.1} parent=1 // pred_fallthru
      _
    // Predicated region
    $region22: #{tpu_custom_call.1} parent=1 // pred_check
      _
    $region23: #{tpu_custom_call.1} parent=1 // pred_check_branch
      %94 = sbr.rel (0) target = $region25
    $region24: #{tpu_custom_call.1} parent=1 // pred_region
      %s96 = ssub.s32 32, 32
      %97 = vsyncadd [#allocation7], %s96
      %s99 = sshll.u32 [#allocation6], 4
      %s100 = int_to_ptr.vmem [resolvable:$true] %s99
      %102 = dma.vmem_to_hbm [thread:$0]  %s100, 32, %s4, [#allocation7]
    $region25: #{tpu_custom_call.1} parent=1 // pred_fallthru
      _
    // Predicated region
    $region26: #{tpu_custom_call.1} parent=1 // pred_check
      _
    $region27: #{tpu_custom_call.1} parent=1 // pred_check_branch
      %104 = sbr.rel (0) target = $region29
    $region28: #{tpu_custom_call.1} parent=1 // pred_region
      %105 = dma.done [#allocation4], 32
    $region29: #{tpu_custom_call.1} parent=1 // pred_fallthru
      _
    // Predicated region
    $region30: #{tpu_custom_call.1} parent=1 // pred_check
      _
    $region31: #{tpu_custom_call.1} parent=1 // pred_check_branch
      %107 = sbr.rel (0) target = $region33
    $region32: #{tpu_custom_call.1} parent=1 // pred_region
      %108 = dma.done [#allocation7], 32
    $region33: #{tpu_custom_call.1} parent=1 // pred_fallthru
      _
    %109 = vsyncpa [#allocation3], 1
    %110 = vsyncpa [#allocation4], 1
    %111 = vsyncpa [#allocation7], 1

</llo_original>
